<compile_context>
chip_gen: v5e
topology: v5e:2x2
jax: 0.10.0
libtpu: 0.0.40
codegen_flags: <defaults>
</compile_context>

<pallas_src>
from typing import NamedTuple

import jax
import jax.numpy as jnp
from jax.experimental import pallas as pl
from jax.experimental.pallas import tpu as pltpu


# --------------------------------------------------------------------------- #
# Kernel
# --------------------------------------------------------------------------- #
def mlp_kernel(x_ref, w1_ref, b1_ref, w2_ref, b2_ref, o_ref):
    # x_ref : (tm, IN_p)        compute dtype (bf16 or f32)
    # w1_ref: (IN_p, HID_p)     pre-transposed in the wrapper
    # b1_ref: (1, HID_p)        f32
    # w2_ref: (HID_p, OUT_p)    pre-transposed in the wrapper
    # b2_ref: (1, OUT_p)        f32
    # o_ref : (tm, OUT_p)
    x = x_ref[...]
    # linear1: standard (M,K)x(K,N) contraction -> MXU, f32 accumulate.
    z1 = jnp.dot(x, w1_ref[...], preferred_element_type=jnp.float32)
    a1 = jnp.maximum(z1 + b1_ref[...], 0.0)          # bias + ReLU in f32 (VPU)
    # linear2
    z2 = jnp.dot(a1.astype(w2_ref.dtype), w2_ref[...],
                 preferred_element_type=jnp.float32)
    o_ref[...] = (z2 + b2_ref[...]).astype(o_ref.dtype)


# --------------------------------------------------------------------------- #
# Wrapper
# --------------------------------------------------------------------------- #
def _round_up(n, m):
    return (n + m - 1) // m * m


def _sublane_multiple(dtype):
    # Minimum second-to-last tile dim per dtype packing: f32->8, bf16->16, i8->32.
    return max(8, 32 // jnp.dtype(dtype).itemsize)


class MLPParams(NamedTuple):
    w1: jax.Array      # (IN_p, HID_p)  compute dtype
    b1: jax.Array      # (1, HID_p)     f32
    w2: jax.Array      # (HID_p, OUT_p) compute dtype
    b2: jax.Array      # (1, OUT_p)     f32
    in_features: int
    hidden_features: int
    out_features: int


def prepare_mlp_params(w1, b1, w2, b2, *, compute_dtype=jnp.bfloat16,
                       lane_granule=128):
    """Pad (lane-dense), transpose and cast the PyTorch-layout weights ONCE.

    Call this once per parameter set and reuse the result across forward calls
    (the per-call pad/cast was a significant fraction of wall time before).
    Note: bf16 compute is an intentional precision trade-off; pass
    compute_dtype=jnp.float32 for full f32 accuracy.
    lane_granule=128 is native on v5e; 256 better matches v6e/v7x's MXU when
    the real dims are ~128-sized.
    """
    hid, in_f = w1.shape
    out_f = w2.shape[0]
    in_p = _round_up(in_f, lane_granule)
    hid_p = _round_up(hid, lane_granule)
    out_p = _round_up(out_f, lane_granule)

    # Zero padding is exact for linear->ReLU->linear: padded input columns hit
    # zero weight rows, padded hidden units have zero weight+bias (relu(0)=0),
    # padded output columns / batch rows are sliced away after the call.
    w1_t = jnp.pad(w1, ((0, hid_p - hid), (0, in_p - in_f))).T.astype(compute_dtype)
    w2_t = jnp.pad(w2, ((0, out_p - out_f), (0, hid_p - hid))).T.astype(compute_dtype)
    b1_p = jnp.pad(b1, (0, hid_p - hid)).reshape(1, hid_p).astype(jnp.float32)
    b2_p = jnp.pad(b2, (0, out_p - out_f)).reshape(1, out_p).astype(jnp.float32)
    return MLPParams(w1_t, b1_p, w2_t, b2_p, in_f, hid, out_f)


def mlp_forward_prepared(x, params: MLPParams, *, block_rows=512,
                         weight_buffers=None):
    """y = relu(x @ w1.T + b1) @ w2.T + b2 with pre-prepared params."""
    B, in_f = x.shape
    assert in_f == params.in_features, "input feature mismatch"
    in_p, hid_p = params.w1.shape
    out_p = params.w2.shape[1]
    compute_dtype = params.w1.dtype
    out_dtype = x.dtype

    # ---- batch tiling: balanced tiles, dtype-correct sublane rounding ------ #
    sub = _sublane_multiple(compute_dtype)
    num_tiles = pl.cdiv(B, block_rows)
    if num_tiles == 1 and B >= 2 * sub:
        num_tiles = 2                    # keep both v7x TensorCores busy
    tm = _round_up(pl.cdiv(B, num_tiles), sub)
    b_p = num_tiles * tm

    x_p = jnp.pad(x, ((0, b_p - B), (0, in_p - in_f))).astype(compute_dtype)

    # ---- optional single-buffering of the constant-index weight blocks ---- #
    wkw = {}
    if weight_buffers is not None:
        wkw = {"pipeline_mode": pl.Buffered(weight_buffers)}

    # ---- VMEM budget: raise the scoped limit only when actually needed ---- #
    cbytes = jnp.dtype(compute_dtype).itemsize
    est = (2 * (in_p * hid_p + hid_p * out_p) * cbytes      # weights (x2 worst case)
           + 2 * (hid_p + out_p) * 4                        # biases
           + 2 * tm * (in_p + out_p) * cbytes               # x / o double buffers
           + tm * (hid_p + out_p) * 4)                      # f32 intermediates
    vmem_limit = None
    if est > 16 * 1024 * 1024:          # v5e default scoped limit is ~16 MiB
        vmem_limit = min(int(est * 1.25), 100 * 1024 * 1024)
        # TODO(synk): past ~64 MiB (v7x physical VMEM/TC) switch to the
        # K/hidden-tiled accumulator scheme instead of raising the limit.

    out_padded = pl.pallas_call(
        mlp_kernel,
        out_shape=jax.ShapeDtypeStruct((b_p, out_p), out_dtype),
        grid_spec=pltpu.PrefetchScalarGridSpec(
            num_scalar_prefetch=0,
            grid=(num_tiles,),
            in_specs=[
                # x: one batch tile per grid step (DMA pipelined behind MXU).
                pl.BlockSpec((tm, in_p), lambda i: (i, 0)),
                # Weights / biases: constant index_map -> fetched once, resident.
                pl.BlockSpec((in_p, hid_p), lambda i: (0, 0), **wkw),
                pl.BlockSpec((1, hid_p), lambda i: (0, 0), **wkw),
                pl.BlockSpec((hid_p, out_p), lambda i: (0, 0), **wkw),
                pl.BlockSpec((1, out_p), lambda i: (0, 0), **wkw),
            ],
            out_specs=pl.BlockSpec((tm, out_p), lambda i: (i, 0)),
        ),
        compiler_params=pltpu.CompilerParams(
            dimension_semantics=("parallel",),   # batch tiles across TCs (v7x)
            vmem_limit_bytes=vmem_limit,
        ),
    )(x_p, params.w1, params.b1, params.w2, params.b2)

    return out_padded[:B, :params.out_features]


def mlp_forward(x, w1, b1, w2, b2, *, compute_dtype=jnp.bfloat16,
                block_rows=512, lane_granule=128, weight_buffers=None):
    """Convenience one-shot API (prefer prepare_mlp_params + *_prepared)."""
    params = prepare_mlp_params(w1, b1, w2, b2, compute_dtype=compute_dtype,
                                lane_granule=lane_granule)
    return mlp_forward_prepared(x, params, block_rows=block_rows,
                                weight_buffers=weight_buffers)


def mlp_reference(x, w1, b1, w2, b2):
    a1 = jnp.maximum(x @ w1.T + b1, 0.0)
    return a1 @ w2.T + b2


# --------------------------------------------------------------------------- #
# Demo / self-test
# --------------------------------------------------------------------------- #
if __name__ == "__main__":
    key = jax.random.PRNGKey(0)

    def make_params(key, in_f, hid, out_f):
        k1, kb1, k2, kb2 = jax.random.split(key, 4)
        bound1 = 1.0 / (in_f ** 0.5)
        bound2 = 1.0 / (hid ** 0.5)
        w1 = jax.random.uniform(k1, (hid, in_f), minval=-bound1, maxval=bound1,
                                dtype=jnp.float32)
        b1 = jax.random.uniform(kb1, (hid,), minval=-bound1, maxval=bound1,
                                dtype=jnp.float32)
        w2 = jax.random.uniform(k2, (out_f, hid), minval=-bound2, maxval=bound2,
                                dtype=jnp.float32)
        b2 = jax.random.uniform(kb2, (out_f,), minval=-bound2, maxval=bound2,
                                dtype=jnp.float32)
        return w1, b1, w2, b2

    # ---- Test 1: small shapes, f32 compute (tight tolerance) -------------- #
    B, IN, HID, OUT = 8, 32, 64, 16
    kx, kp, key = jax.random.split(key, 3)
    x = jax.random.normal(kx, (B, IN), dtype=jnp.float32)
    w1, b1, w2, b2 = make_params(kp, IN, HID, OUT)

    params_f32 = prepare_mlp_params(w1, b1, w2, b2, compute_dtype=jnp.float32)
    out = jax.block_until_ready(mlp_forward_prepared(x, params_f32))
    ref = mlp_reference(x, w1, b1, w2, b2)
    assert out.shape == (B, OUT)
    assert jnp.allclose(out, ref, atol=1e-5, rtol=1e-5), "f32 mismatch vs reference"

    # ---- Test 2: default bf16 path, uneven batch -> 2 balanced tiles ------ #
    B2, IN2, HID2, OUT2 = 40, 48, 96, 24
    kx, kp, key = jax.random.split(key, 3)
    x2 = jax.random.normal(kx, (B2, IN2), dtype=jnp.float32)
    w1b, b1b, w2b, b2b = make_params(kp, IN2, HID2, OUT2)

    params_bf16 = prepare_mlp_params(w1b, b1b, w2b, b2b)   # bf16 default, reused
    out2 = jax.block_until_ready(mlp_forward_prepared(x2, params_bf16))
    ref2 = mlp_reference(x2, w1b, b1b, w2b, b2b)
    assert out2.shape == (B2, OUT2)
    # bf16 MXU inputs -> looser tolerance vs f32 reference.
    assert jnp.allclose(out2, ref2, atol=1e-1, rtol=1e-1), "bf16 mismatch vs reference"

    print("KERNEL_OK")
</pallas_src>

<mosaic_0001>
module attributes {stable_mosaic.version = 11 : i64} {
  func.func @mlp_kernel(%arg0: i32, %arg1: memref<8x128xf32, #tpu.memory_space<vmem>>, %arg2: memref<128x128xf32, #tpu.memory_space<vmem>>, %arg3: memref<1x128xf32, #tpu.memory_space<vmem>>, %arg4: memref<128x128xf32, #tpu.memory_space<vmem>>, %arg5: memref<1x128xf32, #tpu.memory_space<vmem>>, %arg6: memref<8x128xf32, #tpu.memory_space<vmem>>) attributes {dimension_semantics = [#tpu.dimension_semantics<parallel>], iteration_bounds = array<i64: 1>, scalar_prefetch = 0 : i64, scratch_operands = 0 : i64, tpu.core_type = #tpu.core_type<tc>, window_params = [{transform_indices = @transform_0, window_bounds = array<i64: 8, 128>}, {pipeline_mode = #tpu.pipeline_mode<synchronous>, transform_indices = @transform_1, window_bounds = array<i64: 128, 128>}, {pipeline_mode = #tpu.pipeline_mode<synchronous>, transform_indices = @transform_2, window_bounds = array<i64: 1, 128>}, {pipeline_mode = #tpu.pipeline_mode<synchronous>, transform_indices = @transform_3, window_bounds = array<i64: 128, 128>}, {pipeline_mode = #tpu.pipeline_mode<synchronous>, transform_indices = @transform_4, window_bounds = array<i64: 1, 128>}, {transform_indices = @transform_5, window_bounds = array<i64: 8, 128>}]} {
    %c0 = arith.constant 0 : index
    %c0_0 = arith.constant 0 : index
    %0 = vector.load %arg1[%c0, %c0_0] : memref<8x128xf32, #tpu.memory_space<vmem>>, vector<8x128xf32>
    %c0_1 = arith.constant 0 : index
    %c0_2 = arith.constant 0 : index
    %1 = vector.load %arg2[%c0_1, %c0_2] : memref<128x128xf32, #tpu.memory_space<vmem>>, vector<128x128xf32>
    %cst = arith.constant dense<0.000000e+00> : vector<8x128xf32>
    %2 = tpu.matmul %0, %1, %cst {dimension_numbers = #tpu.dot_dimension_numbers<[1], [0], [0], [1], [0, 0, 1, 1], [], []>} : vector<8x128xf32>, vector<128x128xf32>, vector<8x128xf32> -> vector<8x128xf32>
    %c0_3 = arith.constant 0 : index
    %c0_4 = arith.constant 0 : index
    %3 = vector.load %arg3[%c0_3, %c0_4] : memref<1x128xf32, #tpu.memory_space<vmem>>, vector<1x128xf32>
    %4 = vector.broadcast %3 : vector<1x128xf32> to vector<8x128xf32>
    %5 = arith.addf %2, %4 : vector<8x128xf32>
    %cst_5 = arith.constant 0.000000e+00 : f32
    %6 = vector.broadcast %cst_5 : f32 to vector<8x128xf32>
    %7 = arith.maximumf %5, %6 : vector<8x128xf32>
    %c0_6 = arith.constant 0 : index
    %c0_7 = arith.constant 0 : index
    %8 = vector.load %arg4[%c0_6, %c0_7] : memref<128x128xf32, #tpu.memory_space<vmem>>, vector<128x128xf32>
    %cst_8 = arith.constant dense<0.000000e+00> : vector<8x128xf32>
    %9 = tpu.matmul %7, %8, %cst_8 {dimension_numbers = #tpu.dot_dimension_numbers<[1], [0], [0], [1], [0, 0, 1, 1], [], []>} : vector<8x128xf32>, vector<128x128xf32>, vector<8x128xf32> -> vector<8x128xf32>
    %c0_9 = arith.constant 0 : index
    %c0_10 = arith.constant 0 : index
    %10 = vector.load %arg5[%c0_9, %c0_10] : memref<1x128xf32, #tpu.memory_space<vmem>>, vector<1x128xf32>
    %11 = vector.broadcast %10 : vector<1x128xf32> to vector<8x128xf32>
    %12 = arith.addf %9, %11 : vector<8x128xf32>
    %c0_11 = arith.constant 0 : index
    %c0_12 = arith.constant 0 : index
    %13 = vector.load %arg6[%c0_11, %c0_12] : memref<8x128xf32, #tpu.memory_space<vmem>>, vector<8x128xf32>
    tpu.vector_store %arg6[%c0_11, %c0_12], %12 {strides = array<i32>} : memref<8x128xf32, #tpu.memory_space<vmem>>, vector<8x128xf32>,
    return
  }
  func.func @transform_0(%arg0: i32) -> (i32, i32) {
    %c0_i32 = arith.constant 0 : i32
    %c0_i32_0 = arith.constant 0 : i32
    return %arg0, %c0_i32 : i32, i32
  }
  func.func @transform_1(%arg0: i32) -> (i32, i32) {
    %c0_i32 = arith.constant 0 : i32
    %c0_i32_0 = arith.constant 0 : i32
    %c0_i32_1 = arith.constant 0 : i32
    return %c0_i32, %c0_i32_0 : i32, i32
  }
  func.func @transform_2(%arg0: i32) -> (i32, i32) {
    %c0_i32 = arith.constant 0 : i32
    %c0_i32_0 = arith.constant 0 : i32
    %c0_i32_1 = arith.constant 0 : i32
    return %c0_i32, %c0_i32_0 : i32, i32
  }
  func.func @transform_3(%arg0: i32) -> (i32, i32) {
    %c0_i32 = arith.constant 0 : i32
    %c0_i32_0 = arith.constant 0 : i32
    %c0_i32_1 = arith.constant 0 : i32
    return %c0_i32, %c0_i32_0 : i32, i32
  }
  func.func @transform_4(%arg0: i32) -> (i32, i32) {
    %c0_i32 = arith.constant 0 : i32
    %c0_i32_0 = arith.constant 0 : i32
    %c0_i32_1 = arith.constant 0 : i32
    return %c0_i32, %c0_i32_0 : i32, i32
  }
  func.func @transform_5(%arg0: i32) -> (i32, i32) {
    %c0_i32 = arith.constant 0 : i32
    %c0_i32_0 = arith.constant 0 : i32
    return %arg0, %c0_i32 : i32, i32
  }
}

</mosaic_0001>

<llo_original>
// kernel: tpu_custom_call.1
$region0: #{tpu_custom_call.1}
  #allocation0 [shape = 'u32[]', space=smem, size = 0x4, offset = 0x4, fixed_abs, tag = 'smem constant byte address 0x4 - core index']
  #allocation1 [shape = 'u32[72,128]{1,0:T(1,128)}', space=vmem, size = 0x9000, scoped, tag = 'internal scratch']
  %s0 = inlined_call_operand.hbm [shape: f32[8,128], index: 0, kind: input, shape index: {}]
  %s1 = inlined_call_operand.hbm [shape: f32[128,128], index: 1, kind: input, shape index: {}]
  %s2 = inlined_call_operand.vmem [shape: f32[1,128], index: 2, kind: input, shape index: {}]
  %s3 = inlined_call_operand.hbm [shape: f32[128,128], index: 3, kind: input, shape index: {}]
  %s4 = inlined_call_operand.vmem [shape: f32[1,128], index: 4, kind: input, shape index: {}]
  %s5 = inlined_call_operand.hbm [shape: f32[8,128], index: 5, kind: output, shape index: {}]
  %s6 = sld [smem:[#allocation0]]
  $region42: #{tpu_custom_call.1} parent=0
    _
  %s8 = ssub.s32 1, %s6
  %s9 = scalar_select 0, %s8, %s6
  $region1: #{tpu_custom_call.1} parent=0
    #allocation2 [shape = 'u8[4096]{0}', space=vmem, size = 0x1000, scoped, tag = 'input window, operand 0, single buffered']
    #allocation3 [shape = 's32[1]{0}', space=sflag, size = 0x4, scoped, tag = 'scoped memory for tpu_custom_call.1']
    #allocation4 [shape = 's32[1]{0}', space=sflag, size = 0x4, scoped, tag = 'scoped memory for tpu_custom_call.1']
    #allocation5 [shape = 'u8[65536]{0}', space=vmem, size = 0x10000, scoped, tag = 'input window, operand 1, single buffered']
    #allocation6 [shape = 's32[1]{0}', space=sflag, size = 0x4, scoped, tag = 'scoped memory for tpu_custom_call.1']
    #allocation7 [shape = 'u8[65536]{0}', space=vmem, size = 0x10000, scoped, tag = 'input window, operand 3, single buffered']
    #allocation8 [shape = 'u8[4096]{0}', space=vmem, size = 0x1000, scoped, tag = 'output window, operand 0, single buffered']
    %10 = vsyncpa [#allocation3], 0
    %11 = vsyncpa [#allocation6], 0
    %12 = vsyncpa [#allocation4], 0
    // Predicated region
    $region2: #{tpu_custom_call.1} parent=1 // pred_check
      _
    $region3: #{tpu_custom_call.1} parent=1 // pred_check_branch
      %14 = sbr.rel (0) target = $region5
    $region4: #{tpu_custom_call.1} parent=1 // pred_region
      %16 = vsyncadd [#allocation3], 0
      %s18 = sshll.u32 %s0, 4
      %s19 = int_to_ptr.hbm [resolvable:$true] %s18
      %s20 = sshll.u32 [#allocation2], 4
      %s21 = int_to_ptr.vmem [resolvable:$true] %s20
      %23 = dma.hbm_to_vmem [thread:$0]  %s19, 128, %s21, [#allocation3]
    $region5: #{tpu_custom_call.1} parent=1 // pred_fallthru
      _
    // Predicated region
    $region6: #{tpu_custom_call.1} parent=1 // pred_check
      _
    $region7: #{tpu_custom_call.1} parent=1 // pred_check_branch
      %25 = sbr.rel (0) target = $region9
    $region8: #{tpu_custom_call.1} parent=1 // pred_region
      %27 = vsyncadd [#allocation6], 0
      %s28 = sshll.u32 %s1, 4
      %s29 = int_to_ptr.hbm [resolvable:$true] %s28
      %s30 = sshll.u32 [#allocation5], 4
      %s31 = int_to_ptr.vmem [resolvable:$true] %s30
      %36 = dma.hbm_to_vmem [thread:$0]  %s29, 2048, %s31, [#allocation6], 128, 128, 8
    $region9: #{tpu_custom_call.1} parent=1 // pred_fallthru
      _
    // Predicated region
    $region10: #{tpu_custom_call.1} parent=1 // pred_check
      _
    $region11: #{tpu_custom_call.1} parent=1 // pred_check_branch
      %38 = sbr.rel (0) target = $region13
    $region12: #{tpu_custom_call.1} parent=1 // pred_region
      _
    $region13: #{tpu_custom_call.1} parent=1 // pred_fallthru
      _
    // Predicated region
    $region14: #{tpu_custom_call.1} parent=1 // pred_check
      _
    $region15: #{tpu_custom_call.1} parent=1 // pred_check_branch
      %40 = sbr.rel (0) target = $region17
    $region16: #{tpu_custom_call.1} parent=1 // pred_region
      %42 = vsyncadd [#allocation6], 0
      %s43 = sshll.u32 %s3, 4
      %s44 = int_to_ptr.hbm [resolvable:$true] %s43
      %s45 = sshll.u32 [#allocation7], 4
      %s46 = int_to_ptr.vmem [resolvable:$true] %s45
      %51 = dma.hbm_to_vmem [thread:$0]  %s44, 2048, %s46, [#allocation6], 128, 128, 8
    $region17: #{tpu_custom_call.1} parent=1 // pred_fallthru
      _
    // Predicated region
    $region18: #{tpu_custom_call.1} parent=1 // pred_check
      _
    $region19: #{tpu_custom_call.1} parent=1 // pred_check_branch
      %53 = sbr.rel (0) target = $region21
    $region20: #{tpu_custom_call.1} parent=1 // pred_region
      _
    $region21: #{tpu_custom_call.1} parent=1 // pred_fallthru
      _
    // Predicated region
    $region22: #{tpu_custom_call.1} parent=1 // pred_check
      _
    $region23: #{tpu_custom_call.1} parent=1 // pred_check_branch
      %55 = sbr.rel (0) target = $region25
    $region24: #{tpu_custom_call.1} parent=1 // pred_region
      %57 = dma.done [#allocation3], 128
    $region25: #{tpu_custom_call.1} parent=1 // pred_fallthru
      _
    // Predicated region
    $region26: #{tpu_custom_call.1} parent=1 // pred_check
      _
    $region27: #{tpu_custom_call.1} parent=1 // pred_check_branch
      %59 = sbr.rel (0) target = $region29
    $region28: #{tpu_custom_call.1} parent=1 // pred_region
      %61 = dma.done [#allocation6], 2048
    $region29: #{tpu_custom_call.1} parent=1 // pred_fallthru
      _
    // Predicated region
    $region30: #{tpu_custom_call.1} parent=1 // pred_check
      _
    $region31: #{tpu_custom_call.1} parent=1 // pred_check_branch
      %63 = sbr.rel (0) target = $region33
    $region32: #{tpu_custom_call.1} parent=1 // pred_region
      %65 = dma.done [#allocation6], 2048
    $region33: #{tpu_custom_call.1} parent=1 // pred_fallthru
      _
    %v66 = vld [vmem:[#allocation2] sm:$0xff]
    %v67 = vld [vmem:[#allocation5] sm:$0xff]
    %v68 = vld [vmem:[#allocation5 + $0x8] sm:$0xff]
    %v69 = vld [vmem:[#allocation5 + $0x10] sm:$0xff]
    %v70 = vld [vmem:[#allocation5 + $0x18] sm:$0xff]
    %v71 = vld [vmem:[#allocation5 + $0x20] sm:$0xff]
    %v72 = vld [vmem:[#allocation5 + $0x28] sm:$0xff]
    %v73 = vld [vmem:[#allocation5 + $0x30] sm:$0xff]
    %v74 = vld [vmem:[#allocation5 + $0x38] sm:$0xff]
    %v75 = vld [vmem:[#allocation5 + $0x40] sm:$0xff]
    %v76 = vld [vmem:[#allocation5 + $0x48] sm:$0xff]
    %v77 = vld [vmem:[#allocation5 + $0x50] sm:$0xff]
    %v78 = vld [vmem:[#allocation5 + $0x58] sm:$0xff]
    %v79 = vld [vmem:[#allocation5 + $0x60] sm:$0xff]
    %v80 = vld [vmem:[#allocation5 + $0x68] sm:$0xff]
    %v81 = vld [vmem:[#allocation5 + $0x70] sm:$0xff]
    %v82 = vld [vmem:[#allocation5 + $0x78] sm:$0xff]
    %v83 = vld [vmem:[%s2] sm:$0x1]
    %v85 = vperm.slane %v83, 0
    %87 = vmatpush.msra.mxu0 %v82
    %88 = vmatpush.msra.mxu0 %v81
    %89 = vmatpush.msra.mxu0 %v80
    %90 = vmatpush.msra.mxu0 %v79
    %91 = vmatpush.msra.mxu0 %v78
    %92 = vmatpush.msra.mxu0 %v77
    %93 = vmatpush.msra.mxu0 %v76
    %94 = vmatpush.msra.mxu0 %v75
    %95 = vmatpush.msra.mxu0 %v74
    %96 = vmatpush.msra.mxu0 %v73
    %97 = vmatpush.msra.mxu0 %v72
    %98 = vmatpush.msra.mxu0 %v71
    %99 = vmatpush.msra.mxu0 %v70
    %100 = vmatpush.msra.mxu0 %v69
    %101 = vmatpush.msra.mxu0 %v68
    %102 = vmatpush.msra.mxu0 %v67
    %103 = vmatmul.f32.gmra.mxu0 %v66
    %v104 = vpop.f32.mrf.mxu0
    %v105 = vadd.f32 %v85, %v104
    %106 = vdwg.mxu0
    %v107 = vmax.f32 %v105, 0.0
    %v108 = vld [vmem:[#allocation7] sm:$0xff]
    %v109 = vld [vmem:[#allocation7 + $0x8] sm:$0xff]
    %v110 = vld [vmem:[#allocation7 + $0x10] sm:$0xff]
    %v111 = vld [vmem:[#allocation7 + $0x18] sm:$0xff]
    %v112 = vld [vmem:[#allocation7 + $0x20] sm:$0xff]
    %v113 = vld [vmem:[#allocation7 + $0x28] sm:$0xff]
    %v114 = vld [vmem:[#allocation7 + $0x30] sm:$0xff]
    %v115 = vld [vmem:[#allocation7 + $0x38] sm:$0xff]
    %v116 = vld [vmem:[#allocation7 + $0x40] sm:$0xff]
    %v117 = vld [vmem:[#allocation7 + $0x48] sm:$0xff]
    %v118 = vld [vmem:[#allocation7 + $0x50] sm:$0xff]
    %v119 = vld [vmem:[#allocation7 + $0x58] sm:$0xff]
    %v120 = vld [vmem:[#allocation7 + $0x60] sm:$0xff]
    %v121 = vld [vmem:[#allocation7 + $0x68] sm:$0xff]
    %v122 = vld [vmem:[#allocation7 + $0x70] sm:$0xff]
    %v123 = vld [vmem:[#allocation7 + $0x78] sm:$0xff]
    %v124 = vld [vmem:[%s4] sm:$0x1]
    %v126 = vperm.slane %v124, 0
    %128 = vmatpush.msra.mxu0 %v123
    %129 = vmatpush.msra.mxu0 %v122
    %130 = vmatpush.msra.mxu0 %v121
    %131 = vmatpush.msra.mxu0 %v120
    %132 = vmatpush.msra.mxu0 %v119
    %133 = vmatpush.msra.mxu0 %v118
    %134 = vmatpush.msra.mxu0 %v117
    %135 = vmatpush.msra.mxu0 %v116
    %136 = vmatpush.msra.mxu0 %v115
    %137 = vmatpush.msra.mxu0 %v114
    %138 = vmatpush.msra.mxu0 %v113
    %139 = vmatpush.msra.mxu0 %v112
    %140 = vmatpush.msra.mxu0 %v111
    %141 = vmatpush.msra.mxu0 %v110
    %142 = vmatpush.msra.mxu0 %v109
    %143 = vmatpush.msra.mxu0 %v108
    %144 = vmatmul.f32.gmra.mxu0 %v107
    %v145 = vpop.f32.mrf.mxu0
    %v146 = vadd.f32 %v126, %v145
    %147 = vdwg.mxu0
    %148 = vst [vmem:[#allocation8] sm:$0xff] %v146
    // Predicated region
    $region34: #{tpu_custom_call.1} parent=1 // pred_check
      _
    $region35: #{tpu_custom_call.1} parent=1 // pred_check_branch
      %150 = sbr.rel (0) target = $region37
    $region36: #{tpu_custom_call.1} parent=1 // pred_region
      %152 = vsyncadd [#allocation4], 0
      %s154 = sshll.u32 [#allocation8], 4
      %s155 = int_to_ptr.vmem [resolvable:$true] %s154
      %s156 = sshll.u32 %s5, 4
      %s157 = int_to_ptr.hbm [resolvable:$true] %s156
      %159 = dma.vmem_to_hbm [thread:$0]  %s155, 128, %s157, [#allocation4]
    $region37: #{tpu_custom_call.1} parent=1 // pred_fallthru
      _
    // Predicated region
    $region38: #{tpu_custom_call.1} parent=1 // pred_check
      _
    $region39: #{tpu_custom_call.1} parent=1 // pred_check_branch
      %161 = sbr.rel (0) target = $region41
    $region40: #{tpu_custom_call.1} parent=1 // pred_region
      %163 = dma.done [#allocation4], 128
    $region41: #{tpu_custom_call.1} parent=1 // pred_fallthru
      _
    %164 = vsyncpa [#allocation3], 1
    %165 = vsyncpa [#allocation6], 1
    %166 = vsyncpa [#allocation4], 1

</llo_original>
